<compile_context>
chip_gen: v6e
topology: v6e:2x2x1
jax: 0.10.0
libtpu: 0.0.40
codegen_flags: <defaults>
</compile_context>

<pallas_src>
import numpy as np
import jax
import jax.numpy as jnp
from jax.experimental import pallas as pl
from jax.experimental.pallas import tpu as pltpu

# ---- config (mirrors the relevant fields of the HanLP config object, config.joint = True) ----
HIDDEN = 32        # encoder.hidden_size
N_MLP_ARC = 32     # config.n_mlp_arc
N_MLP_REL = 16     # config.n_mlp_rel
N_RELS = 4         # config.n_rels
VOCAB = 50
PAD_INDEX = 0
B, S = 2, 8

NEG_INF = float("-inf")
NB = 2 + 2 * N_RELS            # 10 biaffine blocks: arc, arc_2nd, rel o0..o3, rel_2nd o0..o3
K2 = 128                       # stage-2 contraction width = one lane tile = width of h
K1 = 64                        # stage-1 contraction width (first 64 cols of h)
S1_COLS = NB * K2              # 1280 stage-1 output columns (one 128-wide block per biaffine)
SLAB_COLS = S1_COLS + K2       # 1408: stage-1 weights + [W_mlp; b_mlp] packed into the last lane tile

# column layout of the fused-MLP output h (128 lanes):
ARC_D0 = 0                     # arc_d  -> cols [0, 32)
REL_D0 = 32                    # rel_d  -> cols [32, 48)
ONE_COL = 48                   # constant-1 column (carries bias_x in stage 1 and bias_y in stage 2)
ARC_H0 = 64                    # arc_h  -> cols [64, 96)
REL_H0 = 96                    # rel_h  -> cols [96, 112)


def biaffine_joint_decoder_kernel(x_ref, keep_ref, w_ref, out_ref):
    x = x_ref[...]                                            # [B*S, HIDDEN]

    # ---- fused shared MLPs (Linear + LeakyReLU(0.1)); output cols = [arc_d|rel_d|1|0|arc_h|rel_h|0]
    w_mlp = w_ref[0:HIDDEN, S1_COLS:SLAB_COLS]                # [HIDDEN, 128]   (tile-aligned slice)
    b_mlp = w_ref[HIDDEN:HIDDEN + 1, S1_COLS:SLAB_COLS]       # [1, 128]
    h = jnp.dot(x, w_mlp, preferred_element_type=jnp.float32) + b_mlp
    h = jnp.where(h >= 0.0, h, 0.1 * h)                       # [B*S, 128]

    # ---- stage 1 of all 10 biaffines in one matmul; bias_x rides the constant-1 column of h.
    tmp = jnp.dot(h[:, :K1], w_ref[:, 0:S1_COLS],
                  preferred_element_type=jnp.float32)         # [B*S, NB*128]

    # ---- stage 2: every 128-wide block contracts against the full h (bias_y rides the const column).
    lhs = tmp.reshape(B, S * NB, K2)                          # row m = dep*NB + block
    rhs = h.reshape(B, S, K2)                                 # row y = head
    out = jnp.einsum('bmk,byk->bmy', lhs, rhs,
                     preferred_element_type=jnp.float32)      # [B, S*NB, S]

    # s_arc.masked_fill_(~mask.unsqueeze(1), -inf): arc blocks only, over the head axis
    out_ref[...] = jnp.where(keep_ref[...] > 0.0, out, NEG_INF)


def biaffine_joint_decoder(x_flat, keep, w_slab):
    """x_flat: [B*S, HIDDEN] f32, keep: [B, S*NB, S] f32 (1 = keep, 0 = -inf), w_slab: [K1, SLAB_COLS]."""
    vmem = pltpu.MemorySpace.VMEM
    return pl.pallas_call(
        biaffine_joint_decoder_kernel,
        out_shape=jax.ShapeDtypeStruct((B, S * NB, S), jnp.float32),
        in_specs=[pl.BlockSpec(memory_space=vmem)] * 3,
        out_specs=pl.BlockSpec(memory_space=vmem),
    )(x_flat, keep, w_slab)


class BiaffineSecondaryModelJAX:
    """JAX/Pallas port of BiaffineSecondaryModel with config.joint = True (BiaffineJointDecoder)."""

    def __init__(self, key):
        ks = jax.random.split(key, 13)

        def init(k, shape, scale=0.1):
            return (scale * jax.random.normal(k, shape)).astype(jnp.float32)

        # TODO(synk): EncoderWithContextualLayer (embeddings + BiLSTM/transformer contextual layer)
        # has no clean standalone Pallas equivalent here; stubbed as an embedding lookup -> [B, S, HIDDEN].
        self.embed = init(ks[0], (VOCAB, HIDDEN))

        # MLP weights stored pre-transposed to [in, out] (torch Linear stores [out, in]; y = x @ W.T + b)
        self.w_arc_d, self.b_arc_d = init(ks[1], (HIDDEN, N_MLP_ARC)), init(ks[2], (1, N_MLP_ARC))
        self.w_arc_h, self.b_arc_h = init(ks[3], (HIDDEN, N_MLP_ARC)), init(ks[4], (1, N_MLP_ARC))
        self.w_rel_d, self.b_rel_d = init(ks[5], (HIDDEN, N_MLP_REL)), init(ks[6], (1, N_MLP_REL))
        self.w_rel_h, self.b_rel_h = init(ks[7], (HIDDEN, N_MLP_REL)), init(ks[8], (1, N_MLP_REL))

        # Biaffine weights: torch.Tensor(n_out, n_in + bias_x, n_in + bias_y)
        # arc: n_out=1 (squeezed), bias_x=True, bias_y=False -> [A+1, A]
        self.w_arc_attn = init(ks[9], (N_MLP_ARC + 1, N_MLP_ARC))
        self.w_arc_attn_2nd = init(ks[10], (N_MLP_ARC + 1, N_MLP_ARC))
        # rel: n_out=N_RELS, bias_x=True, bias_y=True -> [N_RELS, R+1, R+1]
        self.w_rel_attn = init(ks[11], (N_RELS, N_MLP_REL + 1, N_MLP_REL + 1))
        self.w_rel_attn_2nd = init(ks[12], (N_RELS, N_MLP_REL + 1, N_MLP_REL + 1))

        # single packed, lane/sublane-aligned parameter slab consumed by the kernel (built once on host)
        self.w_slab = self._build_weight_slab()

    def _build_weight_slab(self):
        A, R, O = N_MLP_ARC, N_MLP_REL, N_RELS
        slab = np.zeros((K1, SLAB_COLS), np.float32)

        # ---- fused MLP weights/bias, packed into the last lane tile (cols S1_COLS .. S1_COLS+127) ----
        w_mlp = np.zeros((HIDDEN, K2), np.float32)
        b_mlp = np.zeros((K2,), np.float32)
        w_mlp[:, ARC_D0:ARC_D0 + A] = np.asarray(self.w_arc_d)
        b_mlp[ARC_D0:ARC_D0 + A] = np.asarray(self.b_arc_d)[0]
        w_mlp[:, REL_D0:REL_D0 + R] = np.asarray(self.w_rel_d)
        b_mlp[REL_D0:REL_D0 + R] = np.asarray(self.b_rel_d)[0]
        w_mlp[:, ARC_H0:ARC_H0 + A] = np.asarray(self.w_arc_h)
        b_mlp[ARC_H0:ARC_H0 + A] = np.asarray(self.b_arc_h)[0]
        w_mlp[:, REL_H0:REL_H0 + R] = np.asarray(self.w_rel_h)
        b_mlp[REL_H0:REL_H0 + R] = np.asarray(self.b_rel_h)[0]
        b_mlp[ONE_COL] = 1.0                       # constant-1 column: LeakyReLU(0 * x + 1) = 1
        slab[0:HIDDEN, S1_COLS:SLAB_COLS] = w_mlp
        slab[HIDDEN, S1_COLS:SLAB_COLS] = b_mlp

        # ---- stage-1 biaffine weights (cols [0, S1_COLS)), one 128-wide block per biaffine ----
        def place_arc(g, w):                       # w: [A+1, A], bias_x=True, bias_y=False
            w = np.asarray(w)
            base = g * K2
            slab[ARC_D0:ARC_D0 + A, base + ARC_H0:base + ARC_H0 + A] = w[:A, :]
            slab[ONE_COL, base + ARC_H0:base + ARC_H0 + A] = w[A, :]          # bias_x row

        def place_rel(g, w):                       # w: [R+1, R+1], bias_x=True, bias_y=True
            w = np.asarray(w)
            base = g * K2
            slab[REL_D0:REL_D0 + R, base + REL_H0:base + REL_H0 + R] = w[:R, :R]
            slab[ONE_COL, base + REL_H0:base + REL_H0 + R] = w[R, :R]         # bias_x row
            slab[REL_D0:REL_D0 + R, base + ONE_COL] = w[:R, R]                # bias_y column
            slab[ONE_COL, base + ONE_COL] = w[R, R]

        place_arc(0, self.w_arc_attn)
        place_arc(1, self.w_arc_attn_2nd)
        for o in range(N_RELS):
            place_rel(2 + o, self.w_rel_attn[o])
            place_rel(2 + N_RELS + o, self.w_rel_attn_2nd[o])

        return jnp.asarray(slab)

    def __call__(self, words):
        # encoder stub: x, mask = self.encoder(words, ...)
        mask = words != PAD_INDEX                            # [B, S] bool
        x = self.embed[words]                                # [B, S, HIDDEN]

        # keep[b, dep*NB + block, head]: only the 2 arc blocks get -inf at padded heads (built in XLA)
        mask_f = mask.astype(jnp.float32)
        arc_gate = (jnp.arange(NB) < 2).astype(jnp.float32)                   # [NB]
        drop = arc_gate[None, :, None] * (1.0 - mask_f)[:, None, :]           # [B, NB, S]
        keep = jnp.broadcast_to((1.0 - drop)[:, None, :, :],
                                (B, S, NB, S)).reshape(B, S * NB, S)

        packed = biaffine_joint_decoder(x.reshape(B * S, HIDDEN), keep, self.w_slab)
        packed = packed.reshape(B, S, NB, S)                 # (b, dep, block, head)

        s_arc = packed[:, :, 0, :]                                            # [B, S, S]
        s_arc_2nd = packed[:, :, 1, :]                                        # [B, S, S]
        # matches s_rel = rel_attn(rel_d, rel_h).permute(0, 2, 3, 1) -> [B, S, S, n_rels]
        s_rel = jnp.transpose(packed[:, :, 2:2 + N_RELS, :], (0, 1, 3, 2))
        s_rel_2nd = jnp.transpose(packed[:, :, 2 + N_RELS:2 + 2 * N_RELS, :], (0, 1, 3, 2))

        # BiaffineJointDecoder.forward return structure
        return ((s_arc, s_arc_2nd), (s_rel, s_rel_2nd))


def _reference_forward(model, words):
    """Pure-JAX reference of BiaffineJointDecoder (for correctness check)."""
    mask = words != PAD_INDEX
    x = model.embed[words]

    def mlp(w, b):
        h = jnp.einsum('bsh,hi->bsi', x, w) + b
        return jnp.where(h >= 0.0, h, 0.1 * h)

    arc_d, arc_h = mlp(model.w_arc_d, model.b_arc_d), mlp(model.w_arc_h, model.b_arc_h)
    rel_d, rel_h = mlp(model.w_rel_d, model.b_rel_d), mlp(model.w_rel_h, model.b_rel_h)
    cat1 = lambda t: jnp.concatenate([t, jnp.ones(t.shape[:-1] + (1,), t.dtype)], axis=-1)

    def arc_biaffine(w):
        s = jnp.einsum('bxi,ij,byj->bxy', cat1(arc_d), w, arc_h)
        return jnp.where(mask[:, None, :], s, NEG_INF)

    def rel_biaffine(w):
        s = jnp.einsum('bxi,oij,byj->boxy', cat1(rel_d), w, cat1(rel_h))
        return jnp.transpose(s, (0, 2, 3, 1))

    return ((arc_biaffine(model.w_arc_attn), arc_biaffine(model.w_arc_attn_2nd)),
            (rel_biaffine(model.w_rel_attn), rel_biaffine(model.w_rel_attn_2nd)))


if __name__ == "__main__":
    key = jax.random.PRNGKey(0)
    model = BiaffineSecondaryModelJAX(key)

    # deterministic word ids; second sentence padded in the last two positions
    wkey = jax.random.fold_in(key, 1)
    words = jax.random.randint(wkey, (B, S), 1, VOCAB, dtype=jnp.int32)
    words = words.at[1, 6:].set(PAD_INDEX)

    (s_arc, s_arc_2nd), (s_rel, s_rel_2nd) = model(words)
    jax.block_until_ready((s_arc, s_arc_2nd, s_rel, s_rel_2nd))

    assert s_arc.shape == (B, S, S) and s_arc_2nd.shape == (B, S, S)
    assert s_rel.shape == (B, S, S, N_RELS) and s_rel_2nd.shape == (B, S, S, N_RELS)

    # correctness check against a pure-JAX reference
    (r_arc, r_arc2), (r_rel, r_rel2) = _reference_forward(model, words)
    for got, want in ((s_arc, r_arc), (s_arc_2nd, r_arc2), (s_rel, r_rel), (s_rel_2nd, r_rel2)):
        assert np.allclose(np.asarray(got), np.asarray(want), rtol=1e-3, atol=1e-3), "mismatch vs reference"

    print("KERNEL_OK")
</pallas_src>

<mosaic_0001>
module attributes {stable_mosaic.version = 11 : i64} {
  func.func @biaffine_joint_decoder_kernel(%arg0: memref<16x32xf32, #tpu.memory_space<vmem>>, %arg1: memref<2x80x8xf32, #tpu.memory_space<vmem>>, %arg2: memref<64x1408xf32, #tpu.memory_space<vmem>>, %arg3: memref<2x80x8xf32, #tpu.memory_space<vmem>>) attributes {dimension_semantics = [], scalar_prefetch = 0 : i64, scratch_operands = 0 : i64, tpu.core_type = #tpu.core_type<tc>} {
    %c0 = arith.constant 0 : index
    %c0_0 = arith.constant 0 : index
    %0 = vector.load %arg0[%c0, %c0_0] : memref<16x32xf32, #tpu.memory_space<vmem>>, vector<16x32xf32>
    %c0_1 = arith.constant 0 : index
    %c1280 = arith.constant 1280 : index
    %1 = vector.load %arg2[%c0_1, %c1280] : memref<64x1408xf32, #tpu.memory_space<vmem>>, vector<32x128xf32>
    %c32 = arith.constant 32 : index
    %c1280_2 = arith.constant 1280 : index
    %2 = vector.load %arg2[%c32, %c1280_2] : memref<64x1408xf32, #tpu.memory_space<vmem>>, vector<1x128xf32>
    %cst = arith.constant dense<0.000000e+00> : vector<16x128xf32>
    %3 = tpu.matmul %0, %1, %cst {dimension_numbers = #tpu.dot_dimension_numbers<[1], [0], [0], [1], [0, 0, 1, 1], [], []>} : vector<16x32xf32>, vector<32x128xf32>, vector<16x128xf32> -> vector<16x128xf32>
    %4 = vector.broadcast %2 : vector<1x128xf32> to vector<16x128xf32>
    %5 = arith.addf %3, %4 : vector<16x128xf32>
    %cst_3 = arith.constant 0.000000e+00 : f32
    %6 = vector.broadcast %cst_3 : f32 to vector<16x128xf32>
    %7 = arith.cmpf oge, %5, %6 : vector<16x128xf32>
    %cst_4 = arith.constant 1.000000e-01 : f32
    %8 = vector.broadcast %cst_4 : f32 to vector<16x128xf32>
    %9 = arith.mulf %8, %5 : vector<16x128xf32>
    %10 = arith.select %7, %5, %9 : vector<16x128xi1>, vector<16x128xf32>
    %11 = vector.extract_strided_slice %10 {offsets = [0, 0], sizes = [16, 64], strides = [1, 1]} : vector<16x128xf32> to vector<16x64xf32>
    %c0_5 = arith.constant 0 : index
    %c0_6 = arith.constant 0 : index
    %12 = vector.load %arg2[%c0_5, %c0_6] : memref<64x1408xf32, #tpu.memory_space<vmem>>, vector<64x1280xf32>
    %cst_7 = arith.constant dense<0.000000e+00> : vector<16x1280xf32>
    %13 = tpu.matmul %11, %12, %cst_7 {dimension_numbers = #tpu.dot_dimension_numbers<[1], [0], [0], [1], [0, 0, 1, 1], [], []>} : vector<16x64xf32>, vector<64x1280xf32>, vector<16x1280xf32> -> vector<16x1280xf32>
    %14 = vector.shape_cast %13 : vector<16x1280xf32> to vector<2x80x128xf32>
    %15 = vector.shape_cast %10 : vector<16x128xf32> to vector<2x8x128xf32>
    "tpu.trace_start"() <{level = 10 : i32, message = "bmk,byk->bmy"}> : () -> ()
    %cst_8 = arith.constant dense<0.000000e+00> : vector<2x80x8xf32>
    %16 = tpu.matmul %14, %15, %cst_8 {dimension_numbers = #tpu.dot_dimension_numbers<[2], [2], [1], [1], [0, 0, 0, 1, 1, 1], [0], [0]>} : vector<2x80x128xf32>, vector<2x8x128xf32>, vector<2x80x8xf32> -> vector<2x80x8xf32>
    "tpu.trace_stop"() : () -> ()
    %c0_9 = arith.constant 0 : index
    %c0_10 = arith.constant 0 : index
    %c0_11 = arith.constant 0 : index
    %17 = vector.load %arg1[%c0_9, %c0_10, %c0_11] : memref<2x80x8xf32, #tpu.memory_space<vmem>>, vector<2x80x8xf32>
    %cst_12 = arith.constant 0.000000e+00 : f32
    %18 = vector.broadcast %cst_12 : f32 to vector<2x80x8xf32>
    %19 = arith.cmpf ogt, %17, %18 : vector<2x80x8xf32>
    %cst_13 = arith.constant 0xFF800000 : f32
    %20 = vector.broadcast %cst_13 : f32 to vector<2x80x8xf32>
    %21 = arith.select %19, %16, %20 : vector<2x80x8xi1>, vector<2x80x8xf32>
    %c0_14 = arith.constant 0 : index
    %c0_15 = arith.constant 0 : index
    %c0_16 = arith.constant 0 : index
    %22 = vector.load %arg3[%c0_14, %c0_15, %c0_16] : memref<2x80x8xf32, #tpu.memory_space<vmem>>, vector<2x80x8xf32>
    tpu.vector_store %arg3[%c0_14, %c0_15, %c0_16], %21 {strides = array<i32>} : memref<2x80x8xf32, #tpu.memory_space<vmem>>, vector<2x80x8xf32>,
    return
  }
}

</mosaic_0001>

<llo_original>
// kernel: tpu_custom_call.1
$region0: #{tpu_custom_call.1}
  #allocation0 [shape = 'u32[]', space=smem, size = 0x4, offset = 0x4, fixed_abs, tag = 'smem constant byte address 0x4 - core index']
  #allocation1 [shape = 'u32[144,128]{1,0:T(1,128)}', space=vmem, size = 0x12000, scoped, tag = 'internal scratch']
  %s0 = inlined_call_operand.vmem [shape: f32[16,32], index: 0, kind: input, shape index: {}]
  %s1 = inlined_call_operand.vmem [shape: f32[2,80,8], index: 1, kind: input, shape index: {}]
  %s2 = inlined_call_operand.hbm [shape: f32[64,1408], index: 2, kind: input, shape index: {}]
  %s3 = inlined_call_operand.vmem [shape: f32[2,80,8], index: 3, kind: output, shape index: {}]
  %s4 = sld [smem:[#allocation0]]
  $region26: #{tpu_custom_call.1} parent=0
    _
  %s6 = ssub.s32 1, %s4
  %s7 = scalar_select 0, %s6, %s4
  $region1: #{tpu_custom_call.1} parent=0
    #allocation2 [shape = 'u8[360448]{0}', space=vmem, size = 0x58000, scoped, tag = 'input window, operand 2, single buffered']
    #allocation3 [shape = 's32[1]{0}', space=sflag, size = 0x4, scoped, tag = 'scoped memory for tpu_custom_call.1']
    %8 = vsyncpa [#allocation3], 0
    // Predicated region
    $region2: #{tpu_custom_call.1} parent=1 // pred_check
      _
    $region3: #{tpu_custom_call.1} parent=1 // pred_check_branch
      %10 = sbr.rel (0) target = $region5
    $region4: #{tpu_custom_call.1} parent=1 // pred_region
      _
    $region5: #{tpu_custom_call.1} parent=1 // pred_fallthru
      _
    // Predicated region
    $region6: #{tpu_custom_call.1} parent=1 // pred_check
      _
    $region7: #{tpu_custom_call.1} parent=1 // pred_check_branch
      %12 = sbr.rel (0) target = $region9
    $region8: #{tpu_custom_call.1} parent=1 // pred_region
      _
    $region9: #{tpu_custom_call.1} parent=1 // pred_fallthru
      _
    // Predicated region
    $region10: #{tpu_custom_call.1} parent=1 // pred_check
      _
    $region11: #{tpu_custom_call.1} parent=1 // pred_check_branch
      %14 = sbr.rel (0) target = $region13
    $region12: #{tpu_custom_call.1} parent=1 // pred_region
      %s16 = ssub.s32 11264, 11264
      %17 = vsyncadd [#allocation3], %s16
      %s18 = sshll.u32 [#allocation2], 4
      %s19 = int_to_ptr.vmem [resolvable:$true] %s18
      %24 = dma.hbm_to_vmem [thread:$0]  %s2, 11264, %s19, [#allocation3], 1408, 1408, 88
    $region13: #{tpu_custom_call.1} parent=1 // pred_fallthru
      _
    // Predicated region
    $region14: #{tpu_custom_call.1} parent=1 // pred_check
      _
    $region15: #{tpu_custom_call.1} parent=1 // pred_check_branch
      %26 = sbr.rel (0) target = $region17
    $region16: #{tpu_custom_call.1} parent=1 // pred_region
      %27 = dma.done [#allocation3], 11264
    $region17: #{tpu_custom_call.1} parent=1 // pred_fallthru
      _
    %v28 = vld [vmem:[%s0] sm:$0xff]
    %v29 = vld [vmem:[%s0 + $0x8] sm:$0xff]
    %v30 = vld [vmem:[#allocation2 + $0x50] sm:$0xff]
    %v31 = vld [vmem:[#allocation2 + $0xa8] sm:$0xff]
    %v32 = vld [vmem:[#allocation2 + $0x100] sm:$0xff]
    %v33 = vld [vmem:[#allocation2 + $0x158] sm:$0xff]
    %v34 = vld [vmem:[#allocation2 + $0x1b0] ss:$0 sm:$0xff]
    %vm35 = vcmask 261120
    %v37 = vsel %vm35, %v28, 0
    %v40 = vsel %vm35, %v29, 0
    %42 = vmatprep.subr.mxu0 0.0
    %43 = vmatpush1.msra.mxu0 0.0
    %44 = vmatprep.subr.mxu0 0.0
    %45 = vmatpush1.msra.mxu0 0.0
    %46 = vmatprep.subr.mxu0 0.0
    %47 = vmatpush1.msra.mxu0 0.0
    %48 = vmatprep.subr.mxu0 0.0
    %49 = vmatpush1.msra.mxu0 0.0
    %50 = vmatprep.subr.mxu0 0.0
    %51 = vmatpush1.msra.mxu0 0.0
    %52 = vmatprep.subr.mxu0 0.0
    %53 = vmatpush1.msra.mxu0 0.0
    %54 = vmatprep.subr.mxu0 0.0
    %55 = vmatpush1.msra.mxu0 0.0
    %56 = vmatprep.subr.mxu0 0.0
    %57 = vmatpush1.msra.mxu0 0.0
    %58 = vmatprep.subr.mxu0 0.0
    %59 = vmatpush1.msra.mxu0 0.0
    %60 = vmatprep.subr.mxu0 0.0
    %61 = vmatpush1.msra.mxu0 0.0
    %62 = vmatprep.subr.mxu0 0.0
    %63 = vmatpush1.msra.mxu0 0.0
    %64 = vmatprep.subr.mxu0 0.0
    %65 = vmatpush1.msra.mxu0 0.0
    %66 = vmatprep.subr.mxu0 0.0
    %67 = vmatpush1.msra.mxu0 %v33
    %68 = vmatprep.subr.mxu0 0.0
    %69 = vmatpush1.msra.mxu0 %v32
    %70 = vmatprep.subr.mxu0 0.0
    %71 = vmatpush1.msra.mxu0 %v31
    %72 = vmatprep.subr.mxu0 0.0
    %73 = vmatpush1.msra.mxu0 %v30
    %74 = vmatprep.subr.mxu0 0.0
    %75 = vmatpush2.msra.mxu0 0.0
    %76 = vmatprep.subr.mxu0 0.0
    %77 = vmatpush2.msra.mxu0 0.0
    %78 = vmatprep.subr.mxu0 0.0
    %79 = vmatpush2.msra.mxu0 0.0
    %80 = vmatprep.subr.mxu0 0.0
    %81 = vmatpush2.msra.mxu0 0.0
    %82 = vmatprep.subr.mxu0 0.0
    %83 = vmatpush2.msra.mxu0 0.0
    %84 = vmatprep.subr.mxu0 0.0
    %85 = vmatpush2.msra.mxu0 0.0
    %86 = vmatprep.subr.mxu0 0.0
    %87 = vmatpush2.msra.mxu0 0.0
    %88 = vmatprep.subr.mxu0 0.0
    %89 = vmatpush2.msra.mxu0 0.0
    %90 = vmatprep.subr.mxu0 0.0
    %91 = vmatpush2.msra.mxu0 0.0
    %92 = vmatprep.subr.mxu0 0.0
    %93 = vmatpush2.msra.mxu0 0.0
    %94 = vmatprep.subr.mxu0 0.0
    %95 = vmatpush2.msra.mxu0 0.0
    %96 = vmatprep.subr.mxu0 0.0
    %97 = vmatpush2.msra.mxu0 0.0
    %98 = vmatprep.subr.mxu0 0.0
    %99 = vmatpush2.msra.mxu0 0.0
    %100 = vmatprep.subr.mxu0 0.0
    %101 = vmatpush2.msra.mxu0 0.0
    %102 = vmatprep.subr.mxu0 0.0
    %103 = vmatpush2.msra.mxu0 0.0
    %104 = vmatprep.subr.mxu0 0.0
    %105 = vmatpush2.msra.mxu0 0.0
    %106 = vmatprep.mubr.f32.mxu0 0.0
    %107 = vmatmul.mubr.f32.gmra.mxu0 %v37
    %v108 = vpop.f32.mrf.mxu0
    %v109 = vadd.f32 %v34, %v108
    %v110 = vpop.f32.mrf.mxu0
    %111 = vmatprep.mubr.f32.mxu0 0.0
    %112 = vmatmul.mubr.f32.gmra.mxu0 %v40
    %v113 = vpop.f32.mrf.mxu0
    %v114 = vadd.f32 %v34, %v113
    %v115 = vpop.f32.mrf.mxu0
    %116 = vdwg.mxu0
    %vm117 = vcmp.ge.f32.partialorder %v109, 0.0
    %vm118 = vcmp.ge.f32.partialorder %v114, 0.0
    %v119 = vmul.f32 %v109, 0.1
    %v120 = vmul.f32 %v114, 0.1
    %v121 = vsel %vm117, %v109, %v119
    %v122 = vsel %vm118, %v114, %v120
    %v123 = vld [vmem:[#allocation2] sm:$0xff]
    %v124 = vld [vmem:[#allocation2 + $0x8] sm:$0xff]
    %v125 = vld [vmem:[#allocation2 + $0x10] sm:$0xff]
    %v126 = vld [vmem:[#allocation2 + $0x18] sm:$0xff]
    %v127 = vld [vmem:[#allocation2 + $0x20] sm:$0xff]
    %v128 = vld [vmem:[#allocation2 + $0x28] sm:$0xff]
    %v129 = vld [vmem:[#allocation2 + $0x30] sm:$0xff]
    %v130 = vld [vmem:[#allocation2 + $0x38] sm:$0xff]
    %v131 = vld [vmem:[#allocation2 + $0x40] sm:$0xff]
    %v132 = vld [vmem:[#allocation2 + $0x48] sm:$0xff]
    %v133 = vld [vmem:[#allocation2 + $0x58] sm:$0xff]
    %v134 = vld [vmem:[#allocation2 + $0x60] sm:$0xff]
    %v135 = vld [vmem:[#allocation2 + $0x68] sm:$0xff]
    %v136 = vld [vmem:[#allocation2 + $0x70] sm:$0xff]
    %v137 = vld [vmem:[#allocation2 + $0x78] sm:$0xff]
    %v138 = vld [vmem:[#allocation2 + $0x80] sm:$0xff]
    %v139 = vld [vmem:[#allocation2 + $0x88] sm:$0xff]
    %v140 = vld [vmem:[#allocation2 + $0x90] sm:$0xff]
    %v141 = vld [vmem:[#allocation2 + $0x98] sm:$0xff]
    %v142 = vld [vmem:[#allocation2 + $0xa0] sm:$0xff]
    %v143 = vld [vmem:[#allocation2 + $0xb0] sm:$0xff]
    %v144 = vld [vmem:[#allocation2 + $0xb8] sm:$0xff]
    %v145 = vld [vmem:[#allocation2 + $0xc0] sm:$0xff]
    %v146 = vld [vmem:[#allocation2 + $0xc8] sm:$0xff]
    %v147 = vld [vmem:[#allocation2 + $0xd0] sm:$0xff]
    %v148 = vld [vmem:[#allocation2 + $0xd8] sm:$0xff]
    %v149 = vld [vmem:[#allocation2 + $0xe0] sm:$0xff]
    %v150 = vld [vmem:[#allocation2 + $0xe8] sm:$0xff]
    %v151 = vld [vmem:[#allocation2 + $0xf0] sm:$0xff]
    %v152 = vld [vmem:[#allocation2 + $0xf8] sm:$0xff]
    %v153 = vld [vmem:[#allocation2 + $0x108] sm:$0xff]
    %v154 = vld [vmem:[#allocation2 + $0x110] sm:$0xff]
    %v155 = vld [vmem:[#allocation2 + $0x118] sm:$0xff]
    %v156 = vld [vmem:[#allocation2 + $0x120] sm:$0xff]
    %v157 = vld [vmem:[#allocation2 + $0x128] sm:$0xff]
    %v158 = vld [vmem:[#allocation2 + $0x130] sm:$0xff]
    %v159 = vld [vmem:[#allocation2 + $0x138] sm:$0xff]
    %v160 = vld [vmem:[#allocation2 + $0x140] sm:$0xff]
    %v161 = vld [vmem:[#allocation2 + $0x148] sm:$0xff]
    %v162 = vld [vmem:[#allocation2 + $0x150] sm:$0xff]
    %v163 = vld [vmem:[#allocation2 + $0x160] sm:$0xff]
    %v164 = vld [vmem:[#allocation2 + $0x168] sm:$0xff]
    %v165 = vld [vmem:[#allocation2 + $0x170] sm:$0xff]
    %v166 = vld [vmem:[#allocation2 + $0x178] sm:$0xff]
    %v167 = vld [vmem:[#allocation2 + $0x180] sm:$0xff]
    %v168 = vld [vmem:[#allocation2 + $0x188] sm:$0xff]
    %v169 = vld [vmem:[#allocation2 + $0x190] sm:$0xff]
    %v170 = vld [vmem:[#allocation2 + $0x198] sm:$0xff]
    %v171 = vld [vmem:[#allocation2 + $0x1a0] sm:$0xff]
    %v172 = vld [vmem:[#allocation2 + $0x1a8] sm:$0xff]
    %v173 = vld [vmem:[#allocation2 + $0x1b8] sm:$0xff]
    %v174 = vld [vmem:[#allocation2 + $0x1c0] sm:$0xff]
    %v175 = vld [vmem:[#allocation2 + $0x1c8] sm:$0xff]
    %v176 = vld [vmem:[#allocation2 + $0x1d0] sm:$0xff]
    %v177 = vld [vmem:[#allocation2 + $0x1d8] sm:$0xff]
    %v178 = vld [vmem:[#allocation2 + $0x1e0] sm:$0xff]
    %v179 = vld [vmem:[#allocation2 + $0x1e8] sm:$0xff]
    %v180 = vld [vmem:[#allocation2 + $0x1f0] sm:$0xff]
    %v181 = vld [vmem:[#allocation2 + $0x1f8] sm:$0xff]
    %v182 = vld [vmem:[#allocation2 + $0x200] sm:$0xff]
    %v183 = vld [vmem:[#allocation2 + $0x210] sm:$0xff]
    %v184 = vld [vmem:[#allocation2 + $0x218] sm:$0xff]
    %v185 = vld [vmem:[#allocation2 + $0x220] sm:$0xff]
    %v186 = vld [vmem:[#allocation2 + $0x228] sm:$0xff]
    %v187 = vld [vmem:[#allocation2 + $0x230] sm:$0xff]
    %v188 = vld [vmem:[#allocation2 + $0x238] sm:$0xff]
    %v189 = vld [vmem:[#allocation2 + $0x240] sm:$0xff]
    %v190 = vld [vmem:[#allocation2 + $0x248] sm:$0xff]
    %v191 = vld [vmem:[#allocation2 + $0x250] sm:$0xff]
    %v192 = vld [vmem:[#allocation2 + $0x258] sm:$0xff]
    %v193 = vld [vmem:[#allocation2 + $0x268] sm:$0xff]
    %v194 = vld [vmem:[#allocation2 + $0x270] sm:$0xff]
    %v195 = vld [vmem:[#allocation2 + $0x278] sm:$0xff]
    %v196 = vld [vmem:[#allocation2 + $0x280] sm:$0xff]
    %v197 = vld [vmem:[#allocation2 + $0x288] sm:$0xff]
    %v198 = vld [vmem:[#allocation2 + $0x290] sm:$0xff]
    %v199 = vld [vmem:[#allocation2 + $0x298] sm:$0xff]
    %v200 = vld [vmem:[#allocation2 + $0x2a0] sm:$0xff]
    %v201 = vld [vmem:[#allocation2 + $0x2a8] sm:$0xff]
    %v202 = vld [vmem:[#allocation2 + $0x2b0] sm:$0xff]
    %vm203 = vcmask 523264
    %v205 = vsel %vm203, %v121, 0
    %v208 = vsel %vm203, %v122, 0
    %210 = vmatprep.subr.mxu0 0.0
    %211 = vmatpush1.msra.mxu0 0.0
    %212 = vmatprep.subr.mxu0 0.0
    %213 = vmatpush1.msra.mxu0 0.0
    %214 = vmatprep.subr.mxu0 0.0
    %215 = vmatpush1.msra.mxu0 0.0
    %216 = vmatprep.subr.mxu0 0.0
    %217 = vmatpush1.msra.mxu0 0.0
    %218 = vmatprep.subr.mxu0 0.0
    %219 = vmatpush1.msra.mxu0 0.0
    %220 = vmatprep.subr.mxu0 0.0
    %221 = vmatpush1.msra.mxu0 0.0
    %222 = vmatprep.subr.mxu0 0.0
    %223 = vmatpush1.msra.mxu0 0.0
    %224 = vmatprep.subr.mxu0 0.0
    %225 = vmatpush1.msra.mxu0 0.0
    %226 = vmatprep.subr.mxu0 %v194
    %227 = vmatpush1.msra.mxu0 %v193
    %228 = vmatprep.subr.mxu0 %v184
    %229 = vmatpush1.msra.mxu0 %v183
    %230 = vmatprep.subr.mxu0 %v174
    %231 = vmatpush1.msra.mxu0 %v173
    %232 = vmatprep.subr.mxu0 %v164
    %233 = vmatpush1.msra.mxu0 %v163
    %234 = vmatprep.subr.mxu0 %v154
    %235 = vmatpush1.msra.mxu0 %v153
    %236 = vmatprep.subr.mxu0 %v144
    %237 = vmatpush1.msra.mxu0 %v143
    %238 = vmatprep.subr.mxu0 %v134
    %239 = vmatpush1.msra.mxu0 %v133
    %240 = vmatprep.subr.mxu0 %v124
    %241 = vmatpush1.msra.mxu0 %v123
    %242 = vmatprep.subr.mxu0 0.0
    %243 = vmatpush2.msra.mxu0 0.0
    %244 = vmatprep.subr.mxu0 0.0
    %245 = vmatpush2.msra.mxu0 0.0
    %246 = vmatprep.subr.mxu0 0.0
    %247 = vmatpush2.msra.mxu0 0.0
    %248 = vmatprep.subr.mxu0 0.0
    %249 = vmatpush2.msra.mxu0 0.0
    %250 = vmatprep.subr.mxu0 0.0
    %251 = vmatpush2.msra.mxu0 0.0
    %252 = vmatprep.subr.mxu0 0.0
    %253 = vmatpush2.msra.mxu0 0.0
    %254 = vmatprep.subr.mxu0 0.0
    %255 = vmatpush2.msra.mxu0 0.0
    %256 = vmatprep.subr.mxu0 0.0
    %257 = vmatpush2.msra.mxu0 0.0
    %258 = vmatprep.subr.mxu0 0.0
    %259 = vmatpush2.msra.mxu0 0.0
    %260 = vmatprep.subr.mxu0 0.0
    %261 = vmatpush2.msra.mxu0 0.0
    %262 = vmatprep.subr.mxu0 0.0
    %263 = vmatpush2.msra.mxu0 0.0
    %264 = vmatprep.subr.mxu0 0.0
    %265 = vmatpush2.msra.mxu0 0.0
    %266 = vmatprep.subr.mxu0 0.0
    %267 = vmatpush2.msra.mxu0 0.0
    %268 = vmatprep.subr.mxu0 0.0
    %269 = vmatpush2.msra.mxu0 0.0
    %270 = vmatprep.subr.mxu0 0.0
    %271 = vmatpush2.msra.mxu0 0.0
    %272 = vmatprep.subr.mxu0 0.0
    %273 = vmatpush2.msra.mxu0 0.0
    %274 = vmatprep.mubr.f32.mxu0 0.0
    %275 = vmatmul.mubr.f32.gmra.mxu0 %v205
    %v276 = vpop.f32.mrf.mxu0
    %v277 = vadd.f32 0.0, %v276
    %v278 = vpop.f32.mrf.mxu0
    %v279 = vadd.f32 0.0, %v278
    %280 = vmatprep.mubr.f32.mxu0 0.0
    %281 = vmatmul.mubr.f32.gmra.mxu0 %v208
    %v282 = vpop.f32.mrf.mxu0
    %v283 = vadd.f32 0.0, %v282
    %v284 = vpop.f32.mrf.mxu0
    %v285 = vadd.f32 0.0, %v284
    %286 = vdwg.mxu0
    %287 = vmatprep.subr.mxu0 0.0
    %288 = vmatpush1.msra.mxu0 0.0
    %289 = vmatprep.subr.mxu0 0.0
    %290 = vmatpush1.msra.mxu0 0.0
    %291 = vmatprep.subr.mxu0 0.0
    %292 = vmatpush1.msra.mxu0 0.0
    %293 = vmatprep.subr.mxu0 0.0
    %294 = vmatpush1.msra.mxu0 0.0
    %295 = vmatprep.subr.mxu0 0.0
    %296 = vmatpush1.msra.mxu0 0.0
    %297 = vmatprep.subr.mxu0 0.0
    %298 = vmatpush1.msra.mxu0 0.0
    %299 = vmatprep.subr.mxu0 0.0
    %300 = vmatpush1.msra.mxu0 0.0
    %301 = vmatprep.subr.mxu0 0.0
    %302 = vmatpush1.msra.mxu0 0.0
    %303 = vmatprep.subr.mxu0 %v196
    %304 = vmatpush1.msra.mxu0 %v195
    %305 = vmatprep.subr.mxu0 %v186
    %306 = vmatpush1.msra.mxu0 %v185
    %307 = vmatprep.subr.mxu0 %v176
    %308 = vmatpush1.msra.mxu0 %v175
    %309 = vmatprep.subr.mxu0 %v166
    %310 = vmatpush1.msra.mxu0 %v165
    %311 = vmatprep.subr.mxu0 %v156
    %312 = vmatpush1.msra.mxu0 %v155
    %313 = vmatprep.subr.mxu0 %v146
    %314 = vmatpush1.msra.mxu0 %v145
    %315 = vmatprep.subr.mxu0 %v136
    %316 = vmatpush1.msra.mxu0 %v135
    %317 = vmatprep.subr.mxu0 %v126
    %318 = vmatpush1.msra.mxu0 %v125
    %319 = vmatprep.subr.mxu0 0.0
    %320 = vmatpush2.msra.mxu0 0.0
    %321 = vmatprep.subr.mxu0 0.0
    %322 = vmatpush2.msra.mxu0 0.0
    %323 = vmatprep.subr.mxu0 0.0
    %324 = vmatpush2.msra.mxu0 0.0
    %325 = vmatprep.subr.mxu0 0.0
    %326 = vmatpush2.msra.mxu0 0.0
    %327 = vmatprep.subr.mxu0 0.0
    %328 = vmatpush2.msra.mxu0 0.0
    %329 = vmatprep.subr.mxu0 0.0
    %330 = vmatpush2.msra.mxu0 0.0
    %331 = vmatprep.subr.mxu0 0.0
    %332 = vmatpush2.msra.mxu0 0.0
    %333 = vmatprep.subr.mxu0 0.0
    %334 = vmatpush2.msra.mxu0 0.0
    %335 = vmatprep.subr.mxu0 0.0
    %336 = vmatpush2.msra.mxu0 0.0
    %337 = vmatprep.subr.mxu0 0.0
    %338 = vmatpush2.msra.mxu0 0.0
    %339 = vmatprep.subr.mxu0 0.0
    %340 = vmatpush2.msra.mxu0 0.0
    %341 = vmatprep.subr.mxu0 0.0
    %342 = vmatpush2.msra.mxu0 0.0
    %343 = vmatprep.subr.mxu0 0.0
    %344 = vmatpush2.msra.mxu0 0.0
    %345 = vmatprep.subr.mxu0 0.0
    %346 = vmatpush2.msra.mxu0 0.0
    %347 = vmatprep.subr.mxu0 0.0
    %348 = vmatpush2.msra.mxu0 0.0
    %349 = vmatprep.subr.mxu0 0.0
    %350 = vmatpush2.msra.mxu0 0.0
    %351 = vmatprep.mubr.f32.mxu0 0.0
    %352 = vmatmul.mubr.f32.gmra.mxu0 %v205
    %v353 = vpop.f32.mrf.mxu0
    %v354 = vadd.f32 0.0, %v353
    %v355 = vpop.f32.mrf.mxu0
    %v356 = vadd.f32 0.0, %v355
    %357 = vmatprep.mubr.f32.mxu0 0.0
    %358 = vmatmul.mubr.f32.gmra.mxu0 %v208
    %v359 = vpop.f32.mrf.mxu0
    %v360 = vadd.f32 0.0, %v359
    %v361 = vpop.f32.mrf.mxu0
    %v362 = vadd.f32 0.0, %v361
    %363 = vdwg.mxu0
    %364 = vmatprep.subr.mxu0 0.0
    %365 = vmatpush1.msra.mxu0 0.0
    %366 = vmatprep.subr.mxu0 0.0
    %367 = vmatpush1.msra.mxu0 0.0
    %368 = vmatprep.subr.mxu0 0.0
    %369 = vmatpush1.msra.mxu0 0.0
    %370 = vmatprep.subr.mxu0 0.0
    %371 = vmatpush1.msra.mxu0 0.0
    %372 = vmatprep.subr.mxu0 0.0
    %373 = vmatpush1.msra.mxu0 0.0
    %374 = vmatprep.subr.mxu0 0.0
    %375 = vmatpush1.msra.mxu0 0.0
    %376 = vmatprep.subr.mxu0 0.0
    %377 = vmatpush1.msra.mxu0 0.0
    %378 = vmatprep.subr.mxu0 0.0
    %379 = vmatpush1.msra.mxu0 0.0
    %380 = vmatprep.subr.mxu0 %v198
    %381 = vmatpush1.msra.mxu0 %v197
    %382 = vmatprep.subr.mxu0 %v188
    %383 = vmatpush1.msra.mxu0 %v187
    %384 = vmatprep.subr.mxu0 %v178
    %385 = vmatpush1.msra.mxu0 %v177
    %386 = vmatprep.subr.mxu0 %v168
    %387 = vmatpush1.msra.mxu0 %v167
    %388 = vmatprep.subr.mxu0 %v158
    %389 = vmatpush1.msra.mxu0 %v157
    %390 = vmatprep.subr.mxu0 %v148
    %391 = vmatpush1.msra.mxu0 %v147
    %392 = vmatprep.subr.mxu0 %v138
    %393 = vmatpush1.msra.mxu0 %v137
    %394 = vmatprep.subr.mxu0 %v128
    %395 = vmatpush1.msra.mxu0 %v127
    %396 = vmatprep.subr.mxu0 0.0
    %397 = vmatpush2.msra.mxu0 0.0
    %398 = vmatprep.subr.mxu0 0.0
    %399 = vmatpush2.msra.mxu0 0.0
    %400 = vmatprep.subr.mxu0 0.0
    %401 = vmatpush2.msra.mxu0 0.0
    %402 = vmatprep.subr.mxu0 0.0
    %403 = vmatpush2.msra.mxu0 0.0
    %404 = vmatprep.subr.mxu0 0.0
    %405 = vmatpush2.msra.mxu0 0.0
    %406 = vmatprep.subr.mxu0 0.0
    %407 = vmatpush2.msra.mxu0 0.0
    %408 = vmatprep.subr.mxu0 0.0
    %409 = vmatpush2.msra.mxu0 0.0
    %410 = vmatprep.subr.mxu0 0.0
    %411 = vmatpush2.msra.mxu0 0.0
    %412 = vmatprep.subr.mxu0 0.0
    %413 = vmatpush2.msra.mxu0 0.0
    %414 = vmatprep.subr.mxu0 0.0
    %415 = vmatpush2.msra.mxu0 0.0
    %416 = vmatprep.subr.mxu0 0.0
    %417 = vmatpush2.msra.mxu0 0.0
    %418 = vmatprep.subr.mxu0 0.0
    %419 = vmatpush2.msra.mxu0 0.0
    %420 = vmatprep.subr.mxu0 0.0
    %421 = vmatpush2.msra.mxu0 0.0
    %422 = vmatprep.subr.mxu0 0.0
    %423 = vmatpush2.msra.mxu0 0.0
    %424 = vmatprep.subr.mxu0 0.0
    %425 = vmatpush2.msra.mxu0 0.0
    %426 = vmatprep.subr.mxu0 0.0
    %427 = vmatpush2.msra.mxu0 0.0
    %428 = vmatprep.mubr.f32.mxu0 0.0
    %429 = vmatmul.mubr.f32.gmra.mxu0 %v205
    %v430 = vpop.f32.mrf.mxu0
    %v431 = vadd.f32 0.0, %v430
    %v432 = vpop.f32.mrf.mxu0
    %v433 = vadd.f32 0.0, %v432
    %434 = vmatprep.mubr.f32.mxu0 0.0
    %435 = vmatmul.mubr.f32.gmra.mxu0 %v208
    %v436 = vpop.f32.mrf.mxu0
    %v437 = vadd.f32 0.0, %v436
    %v438 = vpop.f32.mrf.mxu0
    %v439 = vadd.f32 0.0, %v438
    %440 = vdwg.mxu0
    %441 = vmatprep.subr.mxu0 0.0
    %442 = vmatpush1.msra.mxu0 0.0
    %443 = vmatprep.subr.mxu0 0.0
    %444 = vmatpush1.msra.mxu0 0.0
    %445 = vmatprep.subr.mxu0 0.0
    %446 = vmatpush1.msra.mxu0 0.0
    %447 = vmatprep.subr.mxu0 0.0
    %448 = vmatpush1.msra.mxu0 0.0
    %449 = vmatprep.subr.mxu0 0.0
    %450 = vmatpush1.msra.mxu0 0.0
    %451 = vmatprep.subr.mxu0 0.0
    %452 = vmatpush1.msra.mxu0 0.0
    %453 = vmatprep.subr.mxu0 0.0
    %454 = vmatpush1.msra.mxu0 0.0
    %455 = vmatprep.subr.mxu0 0.0
    %456 = vmatpush1.msra.mxu0 0.0
    %457 = vmatprep.subr.mxu0 %v200
    %458 = vmatpush1.msra.mxu0 %v199
    %459 = vmatprep.subr.mxu0 %v190
    %460 = vmatpush1.msra.mxu0 %v189
    %461 = vmatprep.subr.mxu0 %v180
    %462 = vmatpush1.msra.mxu0 %v179
    %463 = vmatprep.subr.mxu0 %v170
    %464 = vmatpush1.msra.mxu0 %v169
    %465 = vmatprep.subr.mxu0 %v160
    %466 = vmatpush1.msra.mxu0 %v159
    %467 = vmatprep.subr.mxu0 %v150
    %468 = vmatpush1.msra.mxu0 %v149
    %469 = vmatprep.subr.mxu0 %v140
    %470 = vmatpush1.msra.mxu0 %v139
    %471 = vmatprep.subr.mxu0 %v130
    %472 = vmatpush1.msra.mxu0 %v129
    %473 = vmatprep.subr.mxu0 0.0
    %474 = vmatpush2.msra.mxu0 0.0
    %475 = vmatprep.subr.mxu0 0.0
    %476 = vmatpush2.msra.mxu0 0.0
    %477 = vmatprep.subr.mxu0 0.0
    %478 = vmatpush2.msra.mxu0 0.0
    %479 = vmatprep.subr.mxu0 0.0
    %480 = vmatpush2.msra.mxu0 0.0
    %481 = vmatprep.subr.mxu0 0.0
    %482 = vmatpush2.msra.mxu0 0.0
    %483 = vmatprep.subr.mxu0 0.0
    %484 = vmatpush2.msra.mxu0 0.0
    %485 = vmatprep.subr.mxu0 0.0
    %486 = vmatpush2.msra.mxu0 0.0
    %487 = vmatprep.subr.mxu0 0.0
    %488 = vmatpush2.msra.mxu0 0.0
    %489 = vmatprep.subr.mxu0 0.0
    %490 = vmatpush2.msra.mxu0 0.0
    %491 = vmatprep.subr.mxu0 0.0
    %492 = vmatpush2.msra.mxu0 0.0
    %493 = vmatprep.subr.mxu0 0.0
    %494 = vmatpush2.msra.mxu0 0.0
    %495 = vmatprep.subr.mxu0 0.0
    %496 = vmatpush2.msra.mxu0 0.0
    %497 = vmatprep.subr.mxu0 0.0
    %498 = vmatpush2.msra.mxu0 0.0
    %499 = vmatprep.subr.mxu0 0.0
    %500 = vmatpush2.msra.mxu0 0.0
    %501 = vmatprep.subr.mxu0 0.0
    %502 = vmatpush2.msra.mxu0 0.0
    %503 = vmatprep.subr.mxu0 0.0
    %504 = vmatpush2.msra.mxu0 0.0
    %505 = vmatprep.mubr.f32.mxu0 0.0
    %506 = vmatmul.mubr.f32.gmra.mxu0 %v205
    %v507 = vpop.f32.mrf.mxu0
    %v508 = vadd.f32 0.0, %v507
    %v509 = vpop.f32.mrf.mxu0
    %v510 = vadd.f32 0.0, %v509
    %511 = vmatprep.mubr.f32.mxu0 0.0
    %512 = vmatmul.mubr.f32.gmra.mxu0 %v208
    %v513 = vpop.f32.mrf.mxu0
    %v514 = vadd.f32 0.0, %v513
    %v515 = vpop.f32.mrf.mxu0
    %v516 = vadd.f32 0.0, %v515
    %517 = vdwg.mxu0
    %518 = vmatprep.subr.mxu0 0.0
    %519 = vmatpush1.msra.mxu0 0.0
    %520 = vmatprep.subr.mxu0 0.0
    %521 = vmatpush1.msra.mxu0 0.0
    %522 = vmatprep.subr.mxu0 0.0
    %523 = vmatpush1.msra.mxu0 0.0
    %524 = vmatprep.subr.mxu0 0.0
    %525 = vmatpush1.msra.mxu0 0.0
    %526 = vmatprep.subr.mxu0 0.0
    %527 = vmatpush1.msra.mxu0 0.0
    %528 = vmatprep.subr.mxu0 0.0
    %529 = vmatpush1.msra.mxu0 0.0
    %530 = vmatprep.subr.mxu0 0.0
    %531 = vmatpush1.msra.mxu0 0.0
    %532 = vmatprep.subr.mxu0 0.0
    %533 = vmatpush1.msra.mxu0 0.0
    %534 = vmatprep.subr.mxu0 %v202
    %535 = vmatpush1.msra.mxu0 %v201
    %536 = vmatprep.subr.mxu0 %v192
    %537 = vmatpush1.msra.mxu0 %v191
    %538 = vmatprep.subr.mxu0 %v182
    %539 = vmatpush1.msra.mxu0 %v181
    %540 = vmatprep.subr.mxu0 %v172
    %541 = vmatpush1.msra.mxu0 %v171
    %542 = vmatprep.subr.mxu0 %v162
    %543 = vmatpush1.msra.mxu0 %v161
    %544 = vmatprep.subr.mxu0 %v152
    %545 = vmatpush1.msra.mxu0 %v151
    %546 = vmatprep.subr.mxu0 %v142
    %547 = vmatpush1.msra.mxu0 %v141
    %548 = vmatprep.subr.mxu0 %v132
    %549 = vmatpush1.msra.mxu0 %v131
    %550 = vmatprep.subr.mxu0 0.0
    %551 = vmatpush2.msra.mxu0 0.0
    %552 = vmatprep.subr.mxu0 0.0
    %553 = vmatpush2.msra.mxu0 0.0
    %554 = vmatprep.subr.mxu0 0.0
    %555 = vmatpush2.msra.mxu0 0.0
    %556 = vmatprep.subr.mxu0 0.0
    %557 = vmatpush2.msra.mxu0 0.0
    %558 = vmatprep.subr.mxu0 0.0
    %559 = vmatpush2.msra.mxu0 0.0
    %560 = vmatprep.subr.mxu0 0.0
    %561 = vmatpush2.msra.mxu0 0.0
    %562 = vmatprep.subr.mxu0 0.0
    %563 = vmatpush2.msra.mxu0 0.0
    %564 = vmatprep.subr.mxu0 0.0
    %565 = vmatpush2.msra.mxu0 0.0
    %566 = vmatprep.subr.mxu0 0.0
    %567 = vmatpush2.msra.mxu0 0.0
    %568 = vmatprep.subr.mxu0 0.0
    %569 = vmatpush2.msra.mxu0 0.0
    %570 = vmatprep.subr.mxu0 0.0
    %571 = vmatpush2.msra.mxu0 0.0
    %572 = vmatprep.subr.mxu0 0.0
    %573 = vmatpush2.msra.mxu0 0.0
    %574 = vmatprep.subr.mxu0 0.0
    %575 = vmatpush2.msra.mxu0 0.0
    %576 = vmatprep.subr.mxu0 0.0
    %577 = vmatpush2.msra.mxu0 0.0
    %578 = vmatprep.subr.mxu0 0.0
    %579 = vmatpush2.msra.mxu0 0.0
    %580 = vmatprep.subr.mxu0 0.0
    %581 = vmatpush2.msra.mxu0 0.0
    %582 = vmatprep.mubr.f32.mxu0 0.0
    %583 = vmatmul.mubr.f32.gmra.mxu0 %v205
    %v584 = vpop.f32.mrf.mxu0
    %v585 = vadd.f32 0.0, %v584
    %v586 = vpop.f32.mrf.mxu0
    %v587 = vadd.f32 0.0, %v586
    %588 = vmatprep.mubr.f32.mxu0 0.0
    %589 = vmatmul.mubr.f32.gmra.mxu0 %v208
    %v590 = vpop.f32.mrf.mxu0
    %v591 = vadd.f32 0.0, %v590
    %v592 = vpop.f32.mrf.mxu0
    %v593 = vadd.f32 0.0, %v592
    %594 = vdwg.mxu0
    %vm595 = vcmask 1040384
    %v596 = vsel %vm595, %v277, 0.0
    %v597 = vrot.slane %v279, 7
    %vm598 = vcmask 1041409
    %v599 = vsel %vm598, %v597, %v596
    %v600 = vrot.slane %v354, 6
    %vm601 = vcmask 1042434
    %v602 = vsel %vm601, %v600, %v599
    %v603 = vrot.slane %v356, 5
    %vm604 = vcmask 1043459
    %v605 = vsel %vm604, %v603, %v602
    %v606 = vrot.slane %v431, 4
    %vm607 = vcmask 1044484
    %v608 = vsel %vm607, %v606, %v605
    %v609 = vrot.slane %v433, 3
    %vm610 = vcmask 1045509
    %v611 = vsel %vm610, %v609, %v608
    %v612 = vrot.slane %v508, 2
    %vm613 = vcmask 1046534
    %v614 = vsel %vm613, %v612, %v611
    %v615 = vrot.slane %v510, 1
    %vm616 = vcmask 1047559
    %v617 = vsel %vm616, %v615, %v614
    %v618 = vsel %vm595, %v585, 0.0
    %v619 = vrot.slane %v587, 7
    %v620 = vsel %vm598, %v619, %v618
    %v621 = vrot.slane %v277, 7
    %v622 = vsel %vm601, %v621, %v620
    %v623 = vrot.slane %v279, 6
    %v624 = vsel %vm604, %v623, %v622
    %v625 = vrot.slane %v354, 5
    %v626 = vsel %vm607, %v625, %v624
    %v627 = vrot.slane %v356, 4
    %v628 = vsel %vm610, %v627, %v626
    %v629 = vrot.slane %v431, 3
    %v630 = vsel %vm613, %v629, %v628
    %v631 = vrot.slane %v433, 2
    %v632 = vsel %vm616, %v631, %v630
    %v633 = vrot.slane %v508, 1
    %v634 = vsel %vm595, %v633, 0.0
    %v635 = vsel %vm598, %v510, %v634
    %v636 = vrot.slane %v585, 7
    %v637 = vsel %vm601, %v636, %v635
    %v638 = vrot.slane %v587, 6
    %v639 = vsel %vm604, %v638, %v637
    %v640 = vrot.slane %v277, 6
    %v641 = vsel %vm607, %v640, %v639
    %v642 = vrot.slane %v279, 5
    %v643 = vsel %vm610, %v642, %v641
    %v644 = vrot.slane %v354, 4
    %v645 = vsel %vm613, %v644, %v643
    %v646 = vrot.slane %v356, 3
    %v647 = vsel %vm616, %v646, %v645
    %v648 = vrot.slane %v431, 2
    %v649 = vsel %vm595, %v648, 0.0
    %v650 = vrot.slane %v433, 1
    %v651 = vsel %vm598, %v650, %v649
    %v652 = vsel %vm601, %v508, %v651
    %v653 = vrot.slane %v510, 7
    %v654 = vsel %vm604, %v653, %v652
    %v655 = vrot.slane %v585, 6
    %v656 = vsel %vm607, %v655, %v654
    %v657 = vrot.slane %v587, 5
    %v658 = vsel %vm610, %v657, %v656
    %v659 = vrot.slane %v277, 5
    %v660 = vsel %vm613, %v659, %v658
    %v661 = vrot.slane %v279, 4
    %v662 = vsel %vm616, %v661, %v660
    %v663 = vrot.slane %v354, 3
    %v664 = vsel %vm595, %v663, 0.0
    %v665 = vrot.slane %v356, 2
    %v666 = vsel %vm598, %v665, %v664
    %v667 = vrot.slane %v431, 1
    %v668 = vsel %vm601, %v667, %v666
    %v669 = vsel %vm604, %v433, %v668
    %v670 = vrot.slane %v508, 7
    %v671 = vsel %vm607, %v670, %v669
    %v672 = vrot.slane %v510, 6
    %v673 = vsel %vm610, %v672, %v671
    %v674 = vrot.slane %v585, 5
    %v675 = vsel %vm613, %v674, %v673
    %v676 = vrot.slane %v587, 4
    %v677 = vsel %vm616, %v676, %v675
    %v678 = vrot.slane %v277, 4
    %v679 = vsel %vm595, %v678, 0.0
    %v680 = vrot.slane %v279, 3
    %v681 = vsel %vm598, %v680, %v679
    %v682 = vrot.slane %v354, 2
    %v683 = vsel %vm601, %v682, %v681
    %v684 = vrot.slane %v356, 1
    %v685 = vsel %vm604, %v684, %v683
    %v686 = vsel %vm607, %v431, %v685
    %v687 = vrot.slane %v433, 7
    %v688 = vsel %vm610, %v687, %v686
    %v689 = vrot.slane %v508, 6
    %v690 = vsel %vm613, %v689, %v688
    %v691 = vrot.slane %v510, 5
    %v692 = vsel %vm616, %v691, %v690
    %v693 = vrot.slane %v585, 4
    %v694 = vsel %vm595, %v693, 0.0
    %v695 = vrot.slane %v587, 3
    %v696 = vsel %vm598, %v695, %v694
    %v697 = vrot.slane %v277, 3
    %v698 = vsel %vm601, %v697, %v696
    %v699 = vrot.slane %v279, 2
    %v700 = vsel %vm604, %v699, %v698
    %v701 = vrot.slane %v354, 1
    %v702 = vsel %vm607, %v701, %v700
    %v703 = vsel %vm610, %v356, %v702
    %v704 = vrot.slane %v431, 7
    %v705 = vsel %vm613, %v704, %v703
    %v706 = vrot.slane %v433, 6
    %v707 = vsel %vm616, %v706, %v705
    %v708 = vrot.slane %v508, 5
    %v709 = vsel %vm595, %v708, 0.0
    %v710 = vrot.slane %v510, 4
    %v711 = vsel %vm598, %v710, %v709
    %v712 = vrot.slane %v585, 3
    %v713 = vsel %vm601, %v712, %v711
    %v714 = vrot.slane %v587, 2
    %v715 = vsel %vm604, %v714, %v713
    %v716 = vrot.slane %v277, 2
    %v717 = vsel %vm607, %v716, %v715
    %v718 = vrot.slane %v279, 1
    %v719 = vsel %vm610, %v718, %v717
    %v720 = vsel %vm613, %v354, %v719
    %v721 = vrot.slane %v356, 7
    %v722 = vsel %vm616, %v721, %v720
    %v723 = vrot.slane %v431, 6
    %v724 = vsel %vm595, %v723, 0.0
    %v725 = vrot.slane %v433, 5
    %v726 = vsel %vm598, %v725, %v724
    %v727 = vrot.slane %v508, 4
    %v728 = vsel %vm601, %v727, %v726
    %v729 = vrot.slane %v510, 3
    %v730 = vsel %vm604, %v729, %v728
    %v731 = vrot.slane %v585, 2
    %v732 = vsel %vm607, %v731, %v730
    %v733 = vrot.slane %v587, 1
    %v734 = vsel %vm610, %v733, %v732
    %v735 = vrot.slane %v277, 1
    %v736 = vsel %vm613, %v735, %v734
    %v737 = vsel %vm616, %v279, %v736
    %v738 = vrot.slane %v354, 7
    %v739 = vsel %vm595, %v738, 0.0
    %v740 = vrot.slane %v356, 6
    %v741 = vsel %vm598, %v740, %v739
    %v742 = vrot.slane %v431, 5
    %v743 = vsel %vm601, %v742, %v741
    %v744 = vrot.slane %v433, 4
    %v745 = vsel %vm604, %v744, %v743
    %v746 = vrot.slane %v508, 3
    %v747 = vsel %vm607, %v746, %v745
    %v748 = vrot.slane %v510, 2
    %v749 = vsel %vm610, %v748, %v747
    %v750 = vrot.slane %v585, 1
    %v751 = vsel %vm613, %v750, %v749
    %v752 = vsel %vm616, %v587, %v751
    %v753 = vsel %vm595, %v283, 0.0
    %v754 = vrot.slane %v285, 7
    %v755 = vsel %vm598, %v754, %v753
    %v756 = vrot.slane %v360, 6
    %v757 = vsel %vm601, %v756, %v755
    %v758 = vrot.slane %v362, 5
    %v759 = vsel %vm604, %v758, %v757
    %v760 = vrot.slane %v437, 4
    %v761 = vsel %vm607, %v760, %v759
    %v762 = vrot.slane %v439, 3
    %v763 = vsel %vm610, %v762, %v761
    %v764 = vrot.slane %v514, 2
    %v765 = vsel %vm613, %v764, %v763
    %v766 = vrot.slane %v516, 1
    %v767 = vsel %vm616, %v766, %v765
    %v768 = vsel %vm595, %v591, 0.0
    %v769 = vrot.slane %v593, 7
    %v770 = vsel %vm598, %v769, %v768
    %v771 = vrot.slane %v283, 7
    %v772 = vsel %vm601, %v771, %v770
    %v773 = vrot.slane %v285, 6
    %v774 = vsel %vm604, %v773, %v772
    %v775 = vrot.slane %v360, 5
    %v776 = vsel %vm607, %v775, %v774
    %v777 = vrot.slane %v362, 4
    %v778 = vsel %vm610, %v777, %v776
    %v779 = vrot.slane %v437, 3
    %v780 = vsel %vm613, %v779, %v778
    %v781 = vrot.slane %v439, 2
    %v782 = vsel %vm616, %v781, %v780
    %v783 = vrot.slane %v514, 1
    %v784 = vsel %vm595, %v783, 0.0
    %v785 = vsel %vm598, %v516, %v784
    %v786 = vrot.slane %v591, 7
    %v787 = vsel %vm601, %v786, %v785
    %v788 = vrot.slane %v593, 6
    %v789 = vsel %vm604, %v788, %v787
    %v790 = vrot.slane %v283, 6
    %v791 = vsel %vm607, %v790, %v789
    %v792 = vrot.slane %v285, 5
    %v793 = vsel %vm610, %v792, %v791
    %v794 = vrot.slane %v360, 4
    %v795 = vsel %vm613, %v794, %v793
    %v796 = vrot.slane %v362, 3
    %v797 = vsel %vm616, %v796, %v795
    %v798 = vrot.slane %v437, 2
    %v799 = vsel %vm595, %v798, 0.0
    %v800 = vrot.slane %v439, 1
    %v801 = vsel %vm598, %v800, %v799
    %v802 = vsel %vm601, %v514, %v801
    %v803 = vrot.slane %v516, 7
    %v804 = vsel %vm604, %v803, %v802
    %v805 = vrot.slane %v591, 6
    %v806 = vsel %vm607, %v805, %v804
    %v807 = vrot.slane %v593, 5
    %v808 = vsel %vm610, %v807, %v806
    %v809 = vrot.slane %v283, 5
    %v810 = vsel %vm613, %v809, %v808
    %v811 = vrot.slane %v285, 4
    %v812 = vsel %vm616, %v811, %v810
    %v813 = vrot.slane %v360, 3
    %v814 = vsel %vm595, %v813, 0.0
    %v815 = vrot.slane %v362, 2
    %v816 = vsel %vm598, %v815, %v814
    %v817 = vrot.slane %v437, 1
    %v818 = vsel %vm601, %v817, %v816
    %v819 = vsel %vm604, %v439, %v818
    %v820 = vrot.slane %v514, 7
    %v821 = vsel %vm607, %v820, %v819
    %v822 = vrot.slane %v516, 6
    %v823 = vsel %vm610, %v822, %v821
    %v824 = vrot.slane %v591, 5
    %v825 = vsel %vm613, %v824, %v823
    %v826 = vrot.slane %v593, 4
    %v827 = vsel %vm616, %v826, %v825
    %v828 = vrot.slane %v283, 4
    %v829 = vsel %vm595, %v828, 0.0
    %v830 = vrot.slane %v285, 3
    %v831 = vsel %vm598, %v830, %v829
    %v832 = vrot.slane %v360, 2
    %v833 = vsel %vm601, %v832, %v831
    %v834 = vrot.slane %v362, 1
    %v835 = vsel %vm604, %v834, %v833
    %v836 = vsel %vm607, %v437, %v835
    %v837 = vrot.slane %v439, 7
    %v838 = vsel %vm610, %v837, %v836
    %v839 = vrot.slane %v514, 6
    %v840 = vsel %vm613, %v839, %v838
    %v841 = vrot.slane %v516, 5
    %v842 = vsel %vm616, %v841, %v840
    %v843 = vrot.slane %v591, 4
    %v844 = vsel %vm595, %v843, 0.0
    %v845 = vrot.slane %v593, 3
    %v846 = vsel %vm598, %v845, %v844
    %v847 = vrot.slane %v283, 3
    %v848 = vsel %vm601, %v847, %v846
    %v849 = vrot.slane %v285, 2
    %v850 = vsel %vm604, %v849, %v848
    %v851 = vrot.slane %v360, 1
    %v852 = vsel %vm607, %v851, %v850
    %v853 = vsel %vm610, %v362, %v852
    %v854 = vrot.slane %v437, 7
    %v855 = vsel %vm613, %v854, %v853
    %v856 = vrot.slane %v439, 6
    %v857 = vsel %vm616, %v856, %v855
    %v858 = vrot.slane %v514, 5
    %v859 = vsel %vm595, %v858, 0.0
    %v860 = vrot.slane %v516, 4
    %v861 = vsel %vm598, %v860, %v859
    %v862 = vrot.slane %v591, 3
    %v863 = vsel %vm601, %v862, %v861
    %v864 = vrot.slane %v593, 2
    %v865 = vsel %vm604, %v864, %v863
    %v866 = vrot.slane %v283, 2
    %v867 = vsel %vm607, %v866, %v865
    %v868 = vrot.slane %v285, 1
    %v869 = vsel %vm610, %v868, %v867
    %v870 = vsel %vm613, %v360, %v869
    %v871 = vrot.slane %v362, 7
    %v872 = vsel %vm616, %v871, %v870
    %v873 = vrot.slane %v437, 6
    %v874 = vsel %vm595, %v873, 0.0
    %v875 = vrot.slane %v439, 5
    %v876 = vsel %vm598, %v875, %v874
    %v877 = vrot.slane %v514, 4
    %v878 = vsel %vm601, %v877, %v876
    %v879 = vrot.slane %v516, 3
    %v880 = vsel %vm604, %v879, %v878
    %v881 = vrot.slane %v591, 2
    %v882 = vsel %vm607, %v881, %v880
    %v883 = vrot.slane %v593, 1
    %v884 = vsel %vm610, %v883, %v882
    %v885 = vrot.slane %v283, 1
    %v886 = vsel %vm613, %v885, %v884
    %v887 = vsel %vm616, %v285, %v886
    %v888 = vrot.slane %v360, 7
    %v889 = vsel %vm595, %v888, 0.0
    %v890 = vrot.slane %v362, 6
    %v891 = vsel %vm598, %v890, %v889
    %v892 = vrot.slane %v437, 5
    %v893 = vsel %vm601, %v892, %v891
    %v894 = vrot.slane %v439, 4
    %v895 = vsel %vm604, %v894, %v893
    %v896 = vrot.slane %v514, 3
    %v897 = vsel %vm607, %v896, %v895
    %v898 = vrot.slane %v516, 2
    %v899 = vsel %vm610, %v898, %v897
    %v900 = vrot.slane %v591, 1
    %v901 = vsel %vm613, %v900, %v899
    %v902 = vsel %vm616, %v593, %v901
    %903 = vmatprep.subr.mxu0 0.0
    %904 = vmatpush1.xpose.msra.mxu0 0.0
    %905 = vmatprep.subr.mxu0 0.0
    %906 = vmatpush1.xpose.msra.mxu0 0.0
    %907 = vmatprep.subr.mxu0 0.0
    %908 = vmatpush1.xpose.msra.mxu0 0.0
    %909 = vmatprep.subr.mxu0 0.0
    %910 = vmatpush1.xpose.msra.mxu0 0.0
    %911 = vmatprep.subr.mxu0 0.0
    %912 = vmatpush1.xpose.msra.mxu0 0.0
    %913 = vmatprep.subr.mxu0 0.0
    %914 = vmatpush1.xpose.msra.mxu0 0.0
    %915 = vmatprep.subr.mxu0 0.0
    %916 = vmatpush1.xpose.msra.mxu0 0.0
    %917 = vmatprep.subr.mxu0 0.0
    %918 = vmatpush1.xpose.msra.mxu0 0.0
    %919 = vmatprep.subr.mxu0 0.0
    %920 = vmatpush1.xpose.msra.mxu0 0.0
    %921 = vmatprep.subr.mxu0 0.0
    %922 = vmatpush1.xpose.msra.mxu0 0.0
    %923 = vmatprep.subr.mxu0 0.0
    %924 = vmatpush1.xpose.msra.mxu0 0.0
    %925 = vmatprep.subr.mxu0 0.0
    %926 = vmatpush1.xpose.msra.mxu0 0.0
    %927 = vmatprep.subr.mxu0 0.0
    %928 = vmatpush1.xpose.msra.mxu0 0.0
    %929 = vmatprep.subr.mxu0 0.0
    %930 = vmatpush1.xpose.msra.mxu0 0.0
    %931 = vmatprep.subr.mxu0 0.0
    %932 = vmatpush1.xpose.msra.mxu0 0.0
    %933 = vmatprep.subr.mxu0 0.0
    %934 = vmatpush1.xpose.msra.mxu0 %v121
    %935 = vmatprep.subr.mxu0 0.0
    %936 = vmatpush2.xpose.msra.mxu0 0.0
    %937 = vmatprep.subr.mxu0 0.0
    %938 = vmatpush2.xpose.msra.mxu0 0.0
    %939 = vmatprep.subr.mxu0 0.0
    %940 = vmatpush2.xpose.msra.mxu0 0.0
    %941 = vmatprep.subr.mxu0 0.0
    %942 = vmatpush2.xpose.msra.mxu0 0.0
    %943 = vmatprep.subr.mxu0 0.0
    %944 = vmatpush2.xpose.msra.mxu0 0.0
    %945 = vmatprep.subr.mxu0 0.0
    %946 = vmatpush2.xpose.msra.mxu0 0.0
    %947 = vmatprep.subr.mxu0 0.0
    %948 = vmatpush2.xpose.msra.mxu0 0.0
    %949 = vmatprep.subr.mxu0 0.0
    %950 = vmatpush2.xpose.msra.mxu0 0.0
    %951 = vmatprep.subr.mxu0 0.0
    %952 = vmatpush2.xpose.msra.mxu0 0.0
    %953 = vmatprep.subr.mxu0 0.0
    %954 = vmatpush2.xpose.msra.mxu0 0.0
    %955 = vmatprep.subr.mxu0 0.0
    %956 = vmatpush2.xpose.msra.mxu0 0.0
    %957 = vmatprep.subr.mxu0 0.0
    %958 = vmatpush2.xpose.msra.mxu0 0.0
    %959 = vmatprep.subr.mxu0 0.0
    %960 = vmatpush2.xpose.msra.mxu0 0.0
    %961 = vmatprep.subr.mxu0 0.0
    %962 = vmatpush2.xpose.msra.mxu0 0.0
    %963 = vmatprep.subr.mxu0 0.0
    %964 = vmatpush2.xpose.msra.mxu0 0.0
    %965 = vmatprep.subr.mxu0 0.0
    %966 = vmatpush2.xpose.msra.mxu0 0.0
    %967 = vmatprep.mubr.f32.mxu0 0.0
    %968 = vmatmul.mubr.f32.gmra.mxu0 %v617
    %v969 = vpop.f32.mrf.mxu0
    %v970 = vadd.f32 0.0, %v969
    %v971 = vpop.f32.mrf.mxu0
    %972 = vmatprep.mubr.f32.mxu0 0.0
    %973 = vmatmul.mubr.f32.gmra.mxu0 %v632
    %v974 = vpop.f32.mrf.mxu0
    %v975 = vadd.f32 0.0, %v974
    %v976 = vpop.f32.mrf.mxu0
    %977 = vmatprep.mubr.f32.mxu0 0.0
    %978 = vmatmul.mubr.f32.gmra.mxu0 %v647
    %v979 = vpop.f32.mrf.mxu0
    %v980 = vadd.f32 0.0, %v979
    %v981 = vpop.f32.mrf.mxu0
    %982 = vmatprep.mubr.f32.mxu0 0.0
    %983 = vmatmul.mubr.f32.gmra.mxu0 %v662
    %v984 = vpop.f32.mrf.mxu0
    %v985 = vadd.f32 0.0, %v984
    %v986 = vpop.f32.mrf.mxu0
    %987 = vmatprep.mubr.f32.mxu0 0.0
    %988 = vmatmul.mubr.f32.gmra.mxu0 %v677
    %v989 = vpop.f32.mrf.mxu0
    %v990 = vadd.f32 0.0, %v989
    %v991 = vpop.f32.mrf.mxu0
    %992 = vmatprep.mubr.f32.mxu0 0.0
    %993 = vmatmul.mubr.f32.gmra.mxu0 %v692
    %v994 = vpop.f32.mrf.mxu0
    %v995 = vadd.f32 0.0, %v994
    %v996 = vpop.f32.mrf.mxu0
    %997 = vmatprep.mubr.f32.mxu0 0.0
    %998 = vmatmul.mubr.f32.gmra.mxu0 %v707
    %v999 = vpop.f32.mrf.mxu0
    %v1000 = vadd.f32 0.0, %v999
    %v1001 = vpop.f32.mrf.mxu0
    %1002 = vmatprep.mubr.f32.mxu0 0.0
    %1003 = vmatmul.mubr.f32.gmra.mxu0 %v722
    %v1004 = vpop.f32.mrf.mxu0
    %v1005 = vadd.f32 0.0, %v1004
    %v1006 = vpop.f32.mrf.mxu0
    %1007 = vmatprep.mubr.f32.mxu0 0.0
    %1008 = vmatmul.mubr.f32.gmra.mxu0 %v737
    %v1009 = vpop.f32.mrf.mxu0
    %v1010 = vadd.f32 0.0, %v1009
    %v1011 = vpop.f32.mrf.mxu0
    %1012 = vmatprep.mubr.f32.mxu0 0.0
    %1013 = vmatmul.mubr.f32.gmra.mxu0 %v752
    %v1014 = vpop.f32.mrf.mxu0
    %v1015 = vadd.f32 0.0, %v1014
    %v1016 = vpop.f32.mrf.mxu0
    %1017 = vdwg.mxu0
    %1018 = vmatprep.subr.mxu0 0.0
    %1019 = vmatpush1.xpose.msra.mxu0 0.0
    %1020 = vmatprep.subr.mxu0 0.0
    %1021 = vmatpush1.xpose.msra.mxu0 0.0
    %1022 = vmatprep.subr.mxu0 0.0
    %1023 = vmatpush1.xpose.msra.mxu0 0.0
    %1024 = vmatprep.subr.mxu0 0.0
    %1025 = vmatpush1.xpose.msra.mxu0 0.0
    %1026 = vmatprep.subr.mxu0 0.0
    %1027 = vmatpush1.xpose.msra.mxu0 0.0
    %1028 = vmatprep.subr.mxu0 0.0
    %1029 = vmatpush1.xpose.msra.mxu0 0.0
    %1030 = vmatprep.subr.mxu0 0.0
    %1031 = vmatpush1.xpose.msra.mxu0 0.0
    %1032 = vmatprep.subr.mxu0 0.0
    %1033 = vmatpush1.xpose.msra.mxu0 0.0
    %1034 = vmatprep.subr.mxu0 0.0
    %1035 = vmatpush1.xpose.msra.mxu0 0.0
    %1036 = vmatprep.subr.mxu0 0.0
    %1037 = vmatpush1.xpose.msra.mxu0 0.0
    %1038 = vmatprep.subr.mxu0 0.0
    %1039 = vmatpush1.xpose.msra.mxu0 0.0
    %1040 = vmatprep.subr.mxu0 0.0
    %1041 = vmatpush1.xpose.msra.mxu0 0.0
    %1042 = vmatprep.subr.mxu0 0.0
    %1043 = vmatpush1.xpose.msra.mxu0 0.0
    %1044 = vmatprep.subr.mxu0 0.0
    %1045 = vmatpush1.xpose.msra.mxu0 0.0
    %1046 = vmatprep.subr.mxu0 0.0
    %1047 = vmatpush1.xpose.msra.mxu0 0.0
    %1048 = vmatprep.subr.mxu0 0.0
    %1049 = vmatpush1.xpose.msra.mxu0 %v122
    %1050 = vmatprep.subr.mxu0 0.0
    %1051 = vmatpush2.xpose.msra.mxu0 0.0
    %1052 = vmatprep.subr.mxu0 0.0
    %1053 = vmatpush2.xpose.msra.mxu0 0.0
    %1054 = vmatprep.subr.mxu0 0.0
    %1055 = vmatpush2.xpose.msra.mxu0 0.0
    %1056 = vmatprep.subr.mxu0 0.0
    %1057 = vmatpush2.xpose.msra.mxu0 0.0
    %1058 = vmatprep.subr.mxu0 0.0
    %1059 = vmatpush2.xpose.msra.mxu0 0.0
    %1060 = vmatprep.subr.mxu0 0.0
    %1061 = vmatpush2.xpose.msra.mxu0 0.0
    %1062 = vmatprep.subr.mxu0 0.0
    %1063 = vmatpush2.xpose.msra.mxu0 0.0
    %1064 = vmatprep.subr.mxu0 0.0
    %1065 = vmatpush2.xpose.msra.mxu0 0.0
    %1066 = vmatprep.subr.mxu0 0.0
    %1067 = vmatpush2.xpose.msra.mxu0 0.0
    %1068 = vmatprep.subr.mxu0 0.0
    %1069 = vmatpush2.xpose.msra.mxu0 0.0
    %1070 = vmatprep.subr.mxu0 0.0
    %1071 = vmatpush2.xpose.msra.mxu0 0.0
    %1072 = vmatprep.subr.mxu0 0.0
    %1073 = vmatpush2.xpose.msra.mxu0 0.0
    %1074 = vmatprep.subr.mxu0 0.0
    %1075 = vmatpush2.xpose.msra.mxu0 0.0
    %1076 = vmatprep.subr.mxu0 0.0
    %1077 = vmatpush2.xpose.msra.mxu0 0.0
    %1078 = vmatprep.subr.mxu0 0.0
    %1079 = vmatpush2.xpose.msra.mxu0 0.0
    %1080 = vmatprep.subr.mxu0 0.0
    %1081 = vmatpush2.xpose.msra.mxu0 0.0
    %1082 = vmatprep.mubr.f32.mxu0 0.0
    %1083 = vmatmul.mubr.f32.gmra.mxu0 %v767
    %v1084 = vpop.f32.mrf.mxu0
    %v1085 = vadd.f32 0.0, %v1084
    %v1086 = vpop.f32.mrf.mxu0
    %1087 = vmatprep.mubr.f32.mxu0 0.0
    %1088 = vmatmul.mubr.f32.gmra.mxu0 %v782
    %v1089 = vpop.f32.mrf.mxu0
    %v1090 = vadd.f32 0.0, %v1089
    %v1091 = vpop.f32.mrf.mxu0
    %1092 = vmatprep.mubr.f32.mxu0 0.0
    %1093 = vmatmul.mubr.f32.gmra.mxu0 %v797
    %v1094 = vpop.f32.mrf.mxu0
    %v1095 = vadd.f32 0.0, %v1094
    %v1096 = vpop.f32.mrf.mxu0
    %1097 = vmatprep.mubr.f32.mxu0 0.0
    %1098 = vmatmul.mubr.f32.gmra.mxu0 %v812
    %v1099 = vpop.f32.mrf.mxu0
    %v1100 = vadd.f32 0.0, %v1099
    %v1101 = vpop.f32.mrf.mxu0
    %1102 = vmatprep.mubr.f32.mxu0 0.0
    %1103 = vmatmul.mubr.f32.gmra.mxu0 %v827
    %v1104 = vpop.f32.mrf.mxu0
    %v1105 = vadd.f32 0.0, %v1104
    %v1106 = vpop.f32.mrf.mxu0
    %1107 = vmatprep.mubr.f32.mxu0 0.0
    %1108 = vmatmul.mubr.f32.gmra.mxu0 %v842
    %v1109 = vpop.f32.mrf.mxu0
    %v1110 = vadd.f32 0.0, %v1109
    %v1111 = vpop.f32.mrf.mxu0
    %1112 = vmatprep.mubr.f32.mxu0 0.0
    %1113 = vmatmul.mubr.f32.gmra.mxu0 %v857
    %v1114 = vpop.f32.mrf.mxu0
    %v1115 = vadd.f32 0.0, %v1114
    %v1116 = vpop.f32.mrf.mxu0
    %1117 = vmatprep.mubr.f32.mxu0 0.0
    %1118 = vmatmul.mubr.f32.gmra.mxu0 %v872
    %v1119 = vpop.f32.mrf.mxu0
    %v1120 = vadd.f32 0.0, %v1119
    %v1121 = vpop.f32.mrf.mxu0
    %1122 = vmatprep.mubr.f32.mxu0 0.0
    %1123 = vmatmul.mubr.f32.gmra.mxu0 %v887
    %v1124 = vpop.f32.mrf.mxu0
    %v1125 = vadd.f32 0.0, %v1124
    %v1126 = vpop.f32.mrf.mxu0
    %1127 = vmatprep.mubr.f32.mxu0 0.0
    %1128 = vmatmul.mubr.f32.gmra.mxu0 %v902
    %v1129 = vpop.f32.mrf.mxu0
    %v1130 = vadd.f32 0.0, %v1129
    %v1131 = vpop.f32.mrf.mxu0
    %1132 = vdwg.mxu0
    %v1133 = vld [vmem:[%s1] sm:$0xff]
    %v1134 = vld [vmem:[%s1 + $0x8] sm:$0xff]
    %v1135 = vld [vmem:[%s1 + $0x10] sm:$0xff]
    %v1136 = vld [vmem:[%s1 + $0x18] sm:$0xff]
    %v1137 = vld [vmem:[%s1 + $0x20] sm:$0xff]
    %v1138 = vld [vmem:[%s1 + $0x28] sm:$0xff]
    %v1139 = vld [vmem:[%s1 + $0x30] sm:$0xff]
    %v1140 = vld [vmem:[%s1 + $0x38] sm:$0xff]
    %v1141 = vld [vmem:[%s1 + $0x40] sm:$0xff]
    %v1142 = vld [vmem:[%s1 + $0x48] sm:$0xff]
    %v1143 = vld [vmem:[%s1 + $0x50] sm:$0xff]
    %v1144 = vld [vmem:[%s1 + $0x58] sm:$0xff]
    %v1145 = vld [vmem:[%s1 + $0x60] sm:$0xff]
    %v1146 = vld [vmem:[%s1 + $0x68] sm:$0xff]
    %v1147 = vld [vmem:[%s1 + $0x70] sm:$0xff]
    %v1148 = vld [vmem:[%s1 + $0x78] sm:$0xff]
    %v1149 = vld [vmem:[%s1 + $0x80] sm:$0xff]
    %v1150 = vld [vmem:[%s1 + $0x88] sm:$0xff]
    %v1151 = vld [vmem:[%s1 + $0x90] sm:$0xff]
    %v1152 = vld [vmem:[%s1 + $0x98] sm:$0xff]
    %vm1153 = vcmp.gt.f32.partialorder %v1133, 0.0
    %vm1154 = vcmp.gt.f32.partialorder %v1134, 0.0
    %vm1155 = vcmp.gt.f32.partialorder %v1135, 0.0
    %vm1156 = vcmp.gt.f32.partialorder %v1136, 0.0
    %vm1157 = vcmp.gt.f32.partialorder %v1137, 0.0
    %vm1158 = vcmp.gt.f32.partialorder %v1138, 0.0
    %vm1159 = vcmp.gt.f32.partialorder %v1139, 0.0
    %vm1160 = vcmp.gt.f32.partialorder %v1140, 0.0
    %vm1161 = vcmp.gt.f32.partialorder %v1141, 0.0
    %vm1162 = vcmp.gt.f32.partialorder %v1142, 0.0
    %vm1163 = vcmp.gt.f32.partialorder %v1143, 0.0
    %vm1164 = vcmp.gt.f32.partialorder %v1144, 0.0
    %vm1165 = vcmp.gt.f32.partialorder %v1145, 0.0
    %vm1166 = vcmp.gt.f32.partialorder %v1146, 0.0
    %vm1167 = vcmp.gt.f32.partialorder %v1147, 0.0
    %vm1168 = vcmp.gt.f32.partialorder %v1148, 0.0
    %vm1169 = vcmp.gt.f32.partialorder %v1149, 0.0
    %vm1170 = vcmp.gt.f32.partialorder %v1150, 0.0
    %vm1171 = vcmp.gt.f32.partialorder %v1151, 0.0
    %vm1172 = vcmp.gt.f32.partialorder %v1152, 0.0
    %v1173 = vsel %vm1153, %v970, -inf
    %v1174 = vsel %vm1154, %v975, -inf
    %v1175 = vsel %vm1155, %v980, -inf
    %v1176 = vsel %vm1156, %v985, -inf
    %v1177 = vsel %vm1157, %v990, -inf
    %v1178 = vsel %vm1158, %v995, -inf
    %v1179 = vsel %vm1159, %v1000, -inf
    %v1180 = vsel %vm1160, %v1005, -inf
    %v1181 = vsel %vm1161, %v1010, -inf
    %v1182 = vsel %vm1162, %v1015, -inf
    %v1183 = vsel %vm1163, %v1085, -inf
    %v1184 = vsel %vm1164, %v1090, -inf
    %v1185 = vsel %vm1165, %v1095, -inf
    %v1186 = vsel %vm1166, %v1100, -inf
    %v1187 = vsel %vm1167, %v1105, -inf
    %v1188 = vsel %vm1168, %v1110, -inf
    %v1189 = vsel %vm1169, %v1115, -inf
    %v1190 = vsel %vm1170, %v1120, -inf
    %v1191 = vsel %vm1171, %v1125, -inf
    %v1192 = vsel %vm1172, %v1130, -inf
    %vm1193 = vcmask 64512
    %1194 = vst.msk [vmem:[%s3] sm:$0xff] %vm1193, %v1173
    %1195 = vst.msk [vmem:[%s3 + $0x8] sm:$0xff] %vm1193, %v1174
    %1196 = vst.msk [vmem:[%s3 + $0x10] sm:$0xff] %vm1193, %v1175
    %1197 = vst.msk [vmem:[%s3 + $0x18] sm:$0xff] %vm1193, %v1176
    %1198 = vst.msk [vmem:[%s3 + $0x20] sm:$0xff] %vm1193, %v1177
    %1199 = vst.msk [vmem:[%s3 + $0x28] sm:$0xff] %vm1193, %v1178
    %1200 = vst.msk [vmem:[%s3 + $0x30] sm:$0xff] %vm1193, %v1179
    %1201 = vst.msk [vmem:[%s3 + $0x38] sm:$0xff] %vm1193, %v1180
    %1202 = vst.msk [vmem:[%s3 + $0x40] sm:$0xff] %vm1193, %v1181
    %1203 = vst.msk [vmem:[%s3 + $0x48] sm:$0xff] %vm1193, %v1182
    %1204 = vst.msk [vmem:[%s3 + $0x50] sm:$0xff] %vm1193, %v1183
    %1205 = vst.msk [vmem:[%s3 + $0x58] sm:$0xff] %vm1193, %v1184
    %1206 = vst.msk [vmem:[%s3 + $0x60] sm:$0xff] %vm1193, %v1185
    %1207 = vst.msk [vmem:[%s3 + $0x68] sm:$0xff] %vm1193, %v1186
    %1208 = vst.msk [vmem:[%s3 + $0x70] sm:$0xff] %vm1193, %v1187
    %1209 = vst.msk [vmem:[%s3 + $0x78] sm:$0xff] %vm1193, %v1188
    %1210 = vst.msk [vmem:[%s3 + $0x80] sm:$0xff] %vm1193, %v1189
    %1211 = vst.msk [vmem:[%s3 + $0x88] sm:$0xff] %vm1193, %v1190
    %1212 = vst.msk [vmem:[%s3 + $0x90] sm:$0xff] %vm1193, %v1191
    %1213 = vst.msk [vmem:[%s3 + $0x98] sm:$0xff] %vm1193, %v1192
    // Predicated region
    $region18: #{tpu_custom_call.1} parent=1 // pred_check
      _
    $region19: #{tpu_custom_call.1} parent=1 // pred_check_branch
      %1215 = sbr.rel (0) target = $region21
    $region20: #{tpu_custom_call.1} parent=1 // pred_region
      _
    $region21: #{tpu_custom_call.1} parent=1 // pred_fallthru
      _
    // Predicated region
    $region22: #{tpu_custom_call.1} parent=1 // pred_check
      _
    $region23: #{tpu_custom_call.1} parent=1 // pred_check_branch
      %1217 = sbr.rel (0) target = $region25
    $region24: #{tpu_custom_call.1} parent=1 // pred_region
      _
    $region25: #{tpu_custom_call.1} parent=1 // pred_fallthru
      _
    %1218 = vsyncpa [#allocation3], 1

</llo_original>
